<compile_context>
chip_gen: v7x
topology: tpu7x:2x2x1
jax: 0.10.0
libtpu: 0.0.40
codegen_flags: <defaults>
</compile_context>

<pallas_src>
import functools

import jax
import jax.numpy as jnp
from jax.experimental import pallas as pl
from jax.experimental.pallas import tpu as pltpu

COUNT_NORM_FACTOR = 0.2


def _count_embed_kernel(e2t_ref, w_ref, b_ref, out_ref, *, n_agents):
    # e2t_ref: (Bblk, E, T)   w_ref: (2, Dp)   b_ref: (1, Dp)   out_ref: (Bblk, E, Dp)
    e2t = e2t_ref[...].astype(jnp.float32)                    # (Bblk, E, T)

    # Per-task agent / non-agent counts via static-slice reductions (XLU slot),
    # no iota/select and no degenerate MXU push.
    total = jnp.sum(e2t, axis=1)                              # (Bblk, T)
    if n_agents > 0:
        agent = jnp.sum(e2t[:, :n_agents, :], axis=1)         # (Bblk, T)
    else:
        agent = jnp.zeros_like(total)
    non = total - agent                                       # (Bblk, T)

    # nn.Linear(2, D) with 0.2 already folded into w_ref / b_ref on the host:
    #   pertask[b,t,d] = agent[b,t]*w[0,d] + non[b,t]*w[1,d] + bias[d]
    w0 = w_ref[0:1, :]                                        # (1, Dp)
    w1 = w_ref[1:2, :]                                        # (1, Dp)
    bias = b_ref[...]                                         # (1, Dp)
    pertask = (agent[:, :, None] * w0[None, :, :]
               + non[:, :, None] * w1[None, :, :]
               + bias[None, :, :])                            # (Bblk, T, Dp)

    # out = bmm(entity2task, pertask)
    out = jnp.einsum("bet,btd->bed", e2t, pertask,
                     preferred_element_type=jnp.float32)      # (Bblk, E, Dp)
    out_ref[...] = out.astype(out_ref.dtype)


def count_embedder_forward(entity2task, weight, bias, *, n_agents, block_b=8):
    """entity2task: (B, E, T); weight: (D, 2) as in nn.Linear; bias: (D,)."""
    B, E, T = entity2task.shape
    D = weight.shape[0]

    # Lane-dense output: pad embed dim up to a multiple of 128.
    Dp = max(128, pl.cdiv(D, 128) * 128)
    w_scaled = jnp.zeros((2, Dp), jnp.float32).at[:, :D].set(
        (weight.T * COUNT_NORM_FACTOR).astype(jnp.float32))
    b_scaled = jnp.zeros((1, Dp), jnp.float32).at[:, :D].set(
        (bias * COUNT_NORM_FACTOR).astype(jnp.float32))

    # Block the batch dimension; pad B up to a multiple of the block size.
    Bblk = max(1, min(block_b, B))
    Bpad = pl.cdiv(B, Bblk) * Bblk
    x = entity2task
    if Bpad != B:
        x = jnp.pad(x, ((0, Bpad - B), (0, 0), (0, 0)))

    flops = 2 * B * E * T * D + 2 * B * T * 2 * D + 2 * B * E * T
    bytes_accessed = 4 * (B * E * T + B * E * D + 3 * D)

    kernel = functools.partial(_count_embed_kernel, n_agents=n_agents)
    out = pl.pallas_call(
        kernel,
        out_shape=jax.ShapeDtypeStruct((Bpad, E, Dp), entity2task.dtype),
        grid_spec=pltpu.PrefetchScalarGridSpec(
            num_scalar_prefetch=0,
            grid=(Bpad // Bblk,),
            in_specs=[
                pl.BlockSpec((Bblk, E, T), lambda b: (b, 0, 0)),
                pl.BlockSpec((2, Dp), lambda b: (0, 0)),   # resident params
                pl.BlockSpec((1, Dp), lambda b: (0, 0)),   # resident bias
            ],
            out_specs=pl.BlockSpec((Bblk, E, Dp), lambda b: (b, 0, 0)),
        ),
        compiler_params=pltpu.CompilerParams(
            dimension_semantics=("parallel",),
            vmem_limit_bytes=32 * 1024 * 1024,
        ),
        cost_estimate=pl.CostEstimate(
            flops=flops, transcendentals=0, bytes_accessed=bytes_accessed),
    )(x, w_scaled, b_scaled)

    return out[:B, :, :D]


def _reference_forward(entity2task, weight, bias, n_agents):
    agent_cnt = entity2task[:, :n_agents].sum(axis=1)           # (B, T)
    non_cnt = entity2task[:, n_agents:].sum(axis=1)             # (B, T)
    counts = jnp.stack([agent_cnt, non_cnt], axis=-1)           # (B, T, 2)
    pertask = (counts @ weight.T + bias) * COUNT_NORM_FACTOR    # (B, T, D)
    return jnp.einsum("bet,btd->bed", entity2task, pertask)     # (B, E, D)


if __name__ == "__main__":
    B, n_agents, n_entities, n_tasks, embed_dim = 2, 3, 8, 8, 32

    key = jax.random.PRNGKey(0)
    k_assign, k_w, k_b = jax.random.split(key, 3)

    # entity2task: one-hot task assignment per entity (typical input to this module).
    task_ids = jax.random.randint(k_assign, (B, n_entities), 0, n_tasks)
    entity2task = jax.nn.one_hot(task_ids, n_tasks, dtype=jnp.float32)  # (B, E, T)

    # Deterministic nn.Linear(2, embed_dim) parameters (uniform(-1/sqrt(2), 1/sqrt(2))).
    bound = 1.0 / jnp.sqrt(2.0)
    weight = jax.random.uniform(k_w, (embed_dim, 2), jnp.float32, -bound, bound)
    bias = jax.random.uniform(k_b, (embed_dim,), jnp.float32, -bound, bound)

    out = count_embedder_forward(entity2task, weight, bias, n_agents=n_agents)
    out = jax.block_until_ready(out)

    ref = _reference_forward(entity2task, weight, bias, n_agents)
    assert out.shape == (B, n_entities, embed_dim)
    assert jnp.allclose(out, ref, atol=1e-5, rtol=1e-5), "mismatch vs reference"

    print("KERNEL_OK")
</pallas_src>

<mosaic_0001>
module attributes {stable_mosaic.version = 11 : i64} {
  func.func @_count_embed_kernel(%arg0: i32, %arg1: memref<2x8x8xf32, #tpu.memory_space<vmem>>, %arg2: memref<2x128xf32, #tpu.memory_space<vmem>>, %arg3: memref<1x128xf32, #tpu.memory_space<vmem>>, %arg4: memref<2x8x128xf32, #tpu.memory_space<vmem>>) attributes {dimension_semantics = [#tpu.dimension_semantics<parallel>], iteration_bounds = array<i64: 1>, scalar_prefetch = 0 : i64, scratch_operands = 0 : i64, tpu.core_type = #tpu.core_type<tc>, window_params = [{transform_indices = @transform_0, window_bounds = array<i64: 2, 8, 8>}, {pipeline_mode = #tpu.pipeline_mode<synchronous>, transform_indices = @transform_1, window_bounds = array<i64: 2, 128>}, {pipeline_mode = #tpu.pipeline_mode<synchronous>, transform_indices = @transform_2, window_bounds = array<i64: 1, 128>}, {transform_indices = @transform_3, window_bounds = array<i64: 2, 8, 128>}]} {
    %c0 = arith.constant 0 : index
    %c0_0 = arith.constant 0 : index
    %c0_1 = arith.constant 0 : index
    %0 = vector.load %arg1[%c0, %c0_0, %c0_1] : memref<2x8x8xf32, #tpu.memory_space<vmem>>, vector<2x8x8xf32>
    %cst = arith.constant dense<0.000000e+00> : vector<2x8xf32>
    %1 = vector.multi_reduction <add>, %0, %cst [1] : vector<2x8x8xf32> to vector<2x8xf32>
    %2 = vector.extract_strided_slice %0 {offsets = [0, 0, 0], sizes = [2, 3, 8], strides = [1, 1, 1]} : vector<2x8x8xf32> to vector<2x3x8xf32>
    %cst_2 = arith.constant dense<0.000000e+00> : vector<2x8xf32>
    %3 = vector.multi_reduction <add>, %2, %cst_2 [1] : vector<2x3x8xf32> to vector<2x8xf32>
    %4 = arith.subf %1, %3 : vector<2x8xf32>
    %c0_3 = arith.constant 0 : index
    %c0_4 = arith.constant 0 : index
    %5 = vector.load %arg2[%c0_3, %c0_4] : memref<2x128xf32, #tpu.memory_space<vmem>>, vector<1x128xf32>
    %c1 = arith.constant 1 : index
    %c0_5 = arith.constant 0 : index
    %6 = vector.load %arg2[%c1, %c0_5] : memref<2x128xf32, #tpu.memory_space<vmem>>, vector<1x128xf32>
    %c0_6 = arith.constant 0 : index
    %c0_7 = arith.constant 0 : index
    %7 = vector.load %arg3[%c0_6, %c0_7] : memref<1x128xf32, #tpu.memory_space<vmem>>, vector<1x128xf32>
    %8 = vector.shape_cast %3 : vector<2x8xf32> to vector<2x8x1xf32>
    %9 = vector.shape_cast %5 : vector<1x128xf32> to vector<1x1x128xf32>
    %10 = vector.broadcast %8 : vector<2x8x1xf32> to vector<2x8x128xf32>
    %11 = vector.broadcast %9 : vector<1x1x128xf32> to vector<2x8x128xf32>
    %12 = arith.mulf %10, %11 : vector<2x8x128xf32>
    %13 = vector.shape_cast %4 : vector<2x8xf32> to vector<2x8x1xf32>
    %14 = vector.shape_cast %6 : vector<1x128xf32> to vector<1x1x128xf32>
    %15 = vector.broadcast %13 : vector<2x8x1xf32> to vector<2x8x128xf32>
    %16 = vector.broadcast %14 : vector<1x1x128xf32> to vector<2x8x128xf32>
    %17 = arith.mulf %15, %16 : vector<2x8x128xf32>
    %18 = arith.addf %12, %17 : vector<2x8x128xf32>
    %19 = vector.shape_cast %7 : vector<1x128xf32> to vector<1x1x128xf32>
    %20 = vector.broadcast %19 : vector<1x1x128xf32> to vector<2x8x128xf32>
    %21 = arith.addf %18, %20 : vector<2x8x128xf32>
    "tpu.trace_start"() <{level = 10 : i32, message = "bet,btd->bed"}> : () -> ()
    %cst_8 = arith.constant dense<0.000000e+00> : vector<2x8x128xf32>
    %22 = tpu.matmul %0, %21, %cst_8 {dimension_numbers = #tpu.dot_dimension_numbers<[2], [1], [1], [2], [0, 0, 0, 1, 1, 2], [0], [0]>} : vector<2x8x8xf32>, vector<2x8x128xf32>, vector<2x8x128xf32> -> vector<2x8x128xf32>
    "tpu.trace_stop"() : () -> ()
    %c0_9 = arith.constant 0 : index
    %c0_10 = arith.constant 0 : index
    %c0_11 = arith.constant 0 : index
    %23 = vector.load %arg4[%c0_9, %c0_10, %c0_11] : memref<2x8x128xf32, #tpu.memory_space<vmem>>, vector<2x8x128xf32>
    tpu.vector_store %arg4[%c0_9, %c0_10, %c0_11], %22 {strides = array<i32>} : memref<2x8x128xf32, #tpu.memory_space<vmem>>, vector<2x8x128xf32>,
    return
  }
  func.func @transform_0(%arg0: i32) -> (i32, i32, i32) {
    %c0_i32 = arith.constant 0 : i32
    %c0_i32_0 = arith.constant 0 : i32
    %c0_i32_1 = arith.constant 0 : i32
    return %arg0, %c0_i32, %c0_i32_0 : i32, i32, i32
  }
  func.func @transform_1(%arg0: i32) -> (i32, i32) {
    %c0_i32 = arith.constant 0 : i32
    %c0_i32_0 = arith.constant 0 : i32
    %c0_i32_1 = arith.constant 0 : i32
    return %c0_i32, %c0_i32_0 : i32, i32
  }
  func.func @transform_2(%arg0: i32) -> (i32, i32) {
    %c0_i32 = arith.constant 0 : i32
    %c0_i32_0 = arith.constant 0 : i32
    %c0_i32_1 = arith.constant 0 : i32
    return %c0_i32, %c0_i32_0 : i32, i32
  }
  func.func @transform_3(%arg0: i32) -> (i32, i32, i32) {
    %c0_i32 = arith.constant 0 : i32
    %c0_i32_0 = arith.constant 0 : i32
    %c0_i32_1 = arith.constant 0 : i32
    return %arg0, %c0_i32, %c0_i32_0 : i32, i32, i32
  }
}

</mosaic_0001>

<llo_original>
// kernel: tpu_custom_call.1
$region0: #{tpu_custom_call.1}
  #allocation0 [shape = 'u32[]', space=smem, size = 0x4, offset = 0x4, fixed_abs, tag = 'smem constant byte address 0x4 - core index']
  #allocation1 [shape = 'u32[144,128]{1,0:T(1,128)}', space=vmem, size = 0x12000, scoped, tag = 'internal scratch']
  %s0 = inlined_call_operand.hbm [shape: f32[2,8,8], index: 0, kind: input, shape index: {}]
  %s1 = inlined_call_operand.vmem [shape: f32[2,128], index: 1, kind: input, shape index: {}]
  %s2 = inlined_call_operand.vmem [shape: f32[1,128], index: 2, kind: input, shape index: {}]
  %s3 = inlined_call_operand.hbm [shape: f32[2,8,128], index: 3, kind: output, shape index: {}]
  %s4 = sld [smem:[#allocation0]]
  $region26: #{tpu_custom_call.1} parent=0
    _
  %s6 = ssub.s32 1, %s4
  %s7 = scalar_select 0, %s6, %s4
  $region1: #{tpu_custom_call.1} parent=0
    #allocation2 [shape = 'u8[8192]{0}', space=vmem, size = 0x2000, scoped, tag = 'input window, operand 0, single buffered']
    #allocation3 [shape = 's32[1]{0}', space=sflag, size = 0x4, scoped, tag = 'scoped memory for tpu_custom_call.1']
    #allocation4 [shape = 's32[1]{0}', space=sflag, size = 0x4, scoped, tag = 'scoped memory for tpu_custom_call.1']
    #allocation5 [shape = 'u8[8192]{0}', space=vmem, size = 0x2000, scoped, tag = 'output window, operand 0, single buffered']
    %8 = vsyncpa [#allocation3], 0
    %9 = vsyncpa [#allocation4], 0
    // Predicated region
    $region2: #{tpu_custom_call.1} parent=1 // pred_check
      _
    $region3: #{tpu_custom_call.1} parent=1 // pred_check_branch
      %11 = sbr.rel (0) target = $region5
    $region4: #{tpu_custom_call.1} parent=1 // pred_region
      %s13 = ssub.s32 256, 256
      %14 = vsyncadd [#allocation3], %s13
      %s15 = sshll.u32 [#allocation2], 4
      %s16 = int_to_ptr.vmem [resolvable:$true] %s15
      %21 = dma.hbm_to_vmem [thread:$0]  %s0, 256, %s16, [#allocation3], 128, 128, 8
    $region5: #{tpu_custom_call.1} parent=1 // pred_fallthru
      _
    // Predicated region
    $region6: #{tpu_custom_call.1} parent=1 // pred_check
      _
    $region7: #{tpu_custom_call.1} parent=1 // pred_check_branch
      %23 = sbr.rel (0) target = $region9
    $region8: #{tpu_custom_call.1} parent=1 // pred_region
      _
    $region9: #{tpu_custom_call.1} parent=1 // pred_fallthru
      _
    // Predicated region
    $region10: #{tpu_custom_call.1} parent=1 // pred_check
      _
    $region11: #{tpu_custom_call.1} parent=1 // pred_check_branch
      %25 = sbr.rel (0) target = $region13
    $region12: #{tpu_custom_call.1} parent=1 // pred_region
      _
    $region13: #{tpu_custom_call.1} parent=1 // pred_fallthru
      _
    // Predicated region
    $region14: #{tpu_custom_call.1} parent=1 // pred_check
      _
    $region15: #{tpu_custom_call.1} parent=1 // pred_check_branch
      %27 = sbr.rel (0) target = $region17
    $region16: #{tpu_custom_call.1} parent=1 // pred_region
      %28 = dma.done [#allocation3], 256
    $region17: #{tpu_custom_call.1} parent=1 // pred_fallthru
      _
    %v29 = vld [vmem:[#allocation2] sm:$0xff]
    %v30 = vld [vmem:[#allocation2 + $0x8] sm:$0xff]
    %vm31 = vcmask 64512
    %v32 = vsel %vm31, %v29, 0.0
    %v33 = vrot.slane %v32, 4
    %v34 = vadd.f32 %v32, %v33
    %v35 = vrot.slane %v34, 2
    %v36 = vadd.f32 %v34, %v35
    %v37 = vrot.slane %v36, 1
    %v38 = vadd.f32 %v36, %v37
    %v39 = vsel %vm31, %v30, 0.0
    %v40 = vrot.slane %v39, 4
    %v41 = vadd.f32 %v39, %v40
    %v42 = vrot.slane %v41, 2
    %v43 = vadd.f32 %v41, %v42
    %v44 = vrot.slane %v43, 1
    %v45 = vadd.f32 %v43, %v44
    %vm46 = vcmask 59392
    %v47 = vsel %vm46, %v29, 0.0
    %v48 = vrot.slane %v47, 4
    %v49 = vadd.f32 %v47, %v48
    %v50 = vrot.slane %v49, 2
    %v51 = vadd.f32 %v49, %v50
    %v52 = vrot.slane %v51, 1
    %v53 = vadd.f32 %v51, %v52
    %v54 = vsel %vm46, %v30, 0.0
    %v55 = vrot.slane %v54, 4
    %v56 = vadd.f32 %v54, %v55
    %v57 = vrot.slane %v56, 2
    %v58 = vadd.f32 %v56, %v57
    %v59 = vrot.slane %v58, 1
    %v60 = vadd.f32 %v58, %v59
    %v61 = vsub.f32 %v38, %v53
    %v62 = vsub.f32 %v45, %v60
    %v63 = vld [vmem:[%s1] sm:$0x1]
    %v64 = vld [vmem:[%s1 + $0x1] sm:$0x1]
    %v65 = vld [vmem:[%s2] sm:$0x1]
    %67 = vbcast.lane.b32.xlu0 %v53, 256
    %v68 = vpop.permute.xlu0 %67
    %70 = vbcast.lane.b32.xlu0 %v60, 256
    %v71 = vpop.permute.xlu0 %70
    %v72 = vlaneseq
    %v73 = vshrl.u32 %v72, 7
    %v74 = vsub.s32 0, %v73
    %v75 = vrot.slane %v63, %v74
    %v76 = vmul.f32 %v68, %v75
    %v77 = vmul.f32 %v71, %v75
    %79 = vbcast.lane.b32.xlu0 %v61, 256
    %v80 = vpop.permute.xlu0 %79
    %82 = vbcast.lane.b32.xlu0 %v62, 256
    %v83 = vpop.permute.xlu0 %82
    %v84 = vlaneseq
    %v85 = vshrl.u32 %v84, 7
    %v86 = vsub.s32 0, %v85
    %v87 = vrot.slane %v64, %v86
    %v88 = vmul.f32 %v80, %v87
    %v89 = vmul.f32 %v83, %v87
    %v90 = vadd.f32 %v76, %v88
    %v91 = vadd.f32 %v77, %v89
    %v93 = vlaneseq
    %v94 = vshrl.u32 %v93, 7
    %v95 = vsub.s32 0, %v94
    %v96 = vrot.slane %v65, %v95
    %v98 = vadd.f32 %v90, %v96
    %v99 = vadd.f32 %v91, %v96
    %v101 = vsel %vm31, %v29, 0
    %103 = vmatprep.subr.mxu0 0.0
    %104 = vmatpush1.msra.mxu0 %v98
    %105 = vmatprep.subr.mxu0 0.0
    %106 = vmatpush1.msra.mxu0 0.0
    %107 = vmatprep.subr.mxu0 0.0
    %108 = vmatpush1.msra.mxu0 0.0
    %109 = vmatprep.subr.mxu0 0.0
    %110 = vmatpush1.msra.mxu0 0.0
    %111 = vmatprep.subr.mxu0 0.0
    %112 = vmatpush1.msra.mxu0 0.0
    %113 = vmatprep.subr.mxu0 0.0
    %114 = vmatpush1.msra.mxu0 0.0
    %115 = vmatprep.subr.mxu0 0.0
    %116 = vmatpush1.msra.mxu0 0.0
    %117 = vmatprep.subr.mxu0 0.0
    %118 = vmatpush1.msra.mxu0 0.0
    %119 = vmatprep.subr.mxu0 0.0
    %120 = vmatpush1.msra.mxu0 0.0
    %121 = vmatprep.subr.mxu0 0.0
    %122 = vmatpush1.msra.mxu0 0.0
    %123 = vmatprep.subr.mxu0 0.0
    %124 = vmatpush1.msra.mxu0 0.0
    %125 = vmatprep.subr.mxu0 0.0
    %126 = vmatpush1.msra.mxu0 0.0
    %127 = vmatprep.subr.mxu0 0.0
    %128 = vmatpush1.msra.mxu0 0.0
    %129 = vmatprep.subr.mxu0 0.0
    %130 = vmatpush1.msra.mxu0 0.0
    %131 = vmatprep.subr.mxu0 0.0
    %132 = vmatpush1.msra.mxu0 0.0
    %133 = vmatprep.subr.mxu0 0.0
    %134 = vmatpush1.msra.mxu0 0.0
    %135 = vmatprep.subr.mxu0 0.0
    %136 = vmatpush1.msra.mxu0 0.0
    %137 = vmatprep.subr.mxu0 0.0
    %138 = vmatpush1.msra.mxu0 0.0
    %139 = vmatprep.subr.mxu0 0.0
    %140 = vmatpush1.msra.mxu0 0.0
    %141 = vmatprep.subr.mxu0 0.0
    %142 = vmatpush1.msra.mxu0 0.0
    %143 = vmatprep.subr.mxu0 0.0
    %144 = vmatpush1.msra.mxu0 0.0
    %145 = vmatprep.subr.mxu0 0.0
    %146 = vmatpush1.msra.mxu0 0.0
    %147 = vmatprep.subr.mxu0 0.0
    %148 = vmatpush1.msra.mxu0 0.0
    %149 = vmatprep.subr.mxu0 0.0
    %150 = vmatpush1.msra.mxu0 0.0
    %151 = vmatprep.subr.mxu0 0.0
    %152 = vmatpush1.msra.mxu0 0.0
    %153 = vmatprep.subr.mxu0 0.0
    %154 = vmatpush1.msra.mxu0 0.0
    %155 = vmatprep.subr.mxu0 0.0
    %156 = vmatpush1.msra.mxu0 0.0
    %157 = vmatprep.subr.mxu0 0.0
    %158 = vmatpush1.msra.mxu0 0.0
    %159 = vmatprep.subr.mxu0 0.0
    %160 = vmatpush1.msra.mxu0 0.0
    %161 = vmatprep.subr.mxu0 0.0
    %162 = vmatpush1.msra.mxu0 0.0
    %163 = vmatprep.subr.mxu0 0.0
    %164 = vmatpush1.msra.mxu0 0.0
    %165 = vmatprep.subr.mxu0 0.0
    %166 = vmatpush1.msra.mxu0 0.0
    %167 = vmatprep.mubr.f32.mxu0 0.0
    %168 = vmatmul.mubr.f32.gmra.mrb[0].mxu0 %v101
    %v169 = vpop.f32.mrb[0].mxu0
    %v170 = vadd.f32 0.0, %v169
    %v171 = vpop.f32.mrb[0].mxu0
    %172 = vdwg.mxu0
    %v174 = vsel %vm31, %v30, 0
    %176 = vmatprep.subr.mxu0 0.0
    %177 = vmatpush1.msra.mxu0 %v99
    %178 = vmatprep.subr.mxu0 0.0
    %179 = vmatpush1.msra.mxu0 0.0
    %180 = vmatprep.subr.mxu0 0.0
    %181 = vmatpush1.msra.mxu0 0.0
    %182 = vmatprep.subr.mxu0 0.0
    %183 = vmatpush1.msra.mxu0 0.0
    %184 = vmatprep.subr.mxu0 0.0
    %185 = vmatpush1.msra.mxu0 0.0
    %186 = vmatprep.subr.mxu0 0.0
    %187 = vmatpush1.msra.mxu0 0.0
    %188 = vmatprep.subr.mxu0 0.0
    %189 = vmatpush1.msra.mxu0 0.0
    %190 = vmatprep.subr.mxu0 0.0
    %191 = vmatpush1.msra.mxu0 0.0
    %192 = vmatprep.subr.mxu0 0.0
    %193 = vmatpush1.msra.mxu0 0.0
    %194 = vmatprep.subr.mxu0 0.0
    %195 = vmatpush1.msra.mxu0 0.0
    %196 = vmatprep.subr.mxu0 0.0
    %197 = vmatpush1.msra.mxu0 0.0
    %198 = vmatprep.subr.mxu0 0.0
    %199 = vmatpush1.msra.mxu0 0.0
    %200 = vmatprep.subr.mxu0 0.0
    %201 = vmatpush1.msra.mxu0 0.0
    %202 = vmatprep.subr.mxu0 0.0
    %203 = vmatpush1.msra.mxu0 0.0
    %204 = vmatprep.subr.mxu0 0.0
    %205 = vmatpush1.msra.mxu0 0.0
    %206 = vmatprep.subr.mxu0 0.0
    %207 = vmatpush1.msra.mxu0 0.0
    %208 = vmatprep.subr.mxu0 0.0
    %209 = vmatpush1.msra.mxu0 0.0
    %210 = vmatprep.subr.mxu0 0.0
    %211 = vmatpush1.msra.mxu0 0.0
    %212 = vmatprep.subr.mxu0 0.0
    %213 = vmatpush1.msra.mxu0 0.0
    %214 = vmatprep.subr.mxu0 0.0
    %215 = vmatpush1.msra.mxu0 0.0
    %216 = vmatprep.subr.mxu0 0.0
    %217 = vmatpush1.msra.mxu0 0.0
    %218 = vmatprep.subr.mxu0 0.0
    %219 = vmatpush1.msra.mxu0 0.0
    %220 = vmatprep.subr.mxu0 0.0
    %221 = vmatpush1.msra.mxu0 0.0
    %222 = vmatprep.subr.mxu0 0.0
    %223 = vmatpush1.msra.mxu0 0.0
    %224 = vmatprep.subr.mxu0 0.0
    %225 = vmatpush1.msra.mxu0 0.0
    %226 = vmatprep.subr.mxu0 0.0
    %227 = vmatpush1.msra.mxu0 0.0
    %228 = vmatprep.subr.mxu0 0.0
    %229 = vmatpush1.msra.mxu0 0.0
    %230 = vmatprep.subr.mxu0 0.0
    %231 = vmatpush1.msra.mxu0 0.0
    %232 = vmatprep.subr.mxu0 0.0
    %233 = vmatpush1.msra.mxu0 0.0
    %234 = vmatprep.subr.mxu0 0.0
    %235 = vmatpush1.msra.mxu0 0.0
    %236 = vmatprep.subr.mxu0 0.0
    %237 = vmatpush1.msra.mxu0 0.0
    %238 = vmatprep.subr.mxu0 0.0
    %239 = vmatpush1.msra.mxu0 0.0
    %240 = vmatprep.mubr.f32.mxu0 0.0
    %241 = vmatmul.mubr.f32.gmra.mrb[0].mxu0 %v174
    %v242 = vpop.f32.mrb[0].mxu0
    %v243 = vadd.f32 0.0, %v242
    %v244 = vpop.f32.mrb[0].mxu0
    %245 = vdwg.mxu0
    %246 = vst [vmem:[#allocation5] sm:$0xff] %v170
    %247 = vst [vmem:[#allocation5 + $0x8] sm:$0xff] %v243
    // Predicated region
    $region18: #{tpu_custom_call.1} parent=1 // pred_check
      _
    $region19: #{tpu_custom_call.1} parent=1 // pred_check_branch
      %249 = sbr.rel (0) target = $region21
    $region20: #{tpu_custom_call.1} parent=1 // pred_region
      %s251 = ssub.s32 256, 256
      %252 = vsyncadd [#allocation4], %s251
      %s253 = sshll.u32 [#allocation5], 4
      %s254 = int_to_ptr.vmem [resolvable:$true] %s253
      %259 = dma.vmem_to_hbm [thread:$0]  %s254, 256, %s3, [#allocation4], 128, 128, 8
    $region21: #{tpu_custom_call.1} parent=1 // pred_fallthru
      _
    // Predicated region
    $region22: #{tpu_custom_call.1} parent=1 // pred_check
      _
    $region23: #{tpu_custom_call.1} parent=1 // pred_check_branch
      %261 = sbr.rel (0) target = $region25
    $region24: #{tpu_custom_call.1} parent=1 // pred_region
      %262 = dma.done [#allocation4], 256
    $region25: #{tpu_custom_call.1} parent=1 // pred_fallthru
      _
    %263 = vsyncpa [#allocation3], 1
    %264 = vsyncpa [#allocation4], 1

</llo_original>
